<compile_context>
chip_gen: v5e
topology: v5e:2x2
jax: 0.10.0
libtpu: 0.0.40
codegen_flags: <defaults>
</compile_context>

<pallas_src>
import functools
import math

import jax
import jax.numpy as jnp
from jax.experimental import pallas as pl
from jax.experimental.pallas import tpu as pltpu


def _round_up(x, m):
    return (x + m - 1) // m * m


def _pick_tm(m_out, tco):
    """Largest flattened-spatial tile keeping the f32 accumulator <= 512 KiB and
    satisfying the (8,128) block constraint (tm % 8 == 0 or tm == m_out)."""
    cap = max(8, min(1024, (128 * 1024) // tco))
    if m_out <= cap:
        return m_out
    t = cap - cap % 8
    while t >= 8:
        if m_out % t == 0:
            return t
        t -= 8
    return m_out                      # fallback: single whole-image tile


# ----------------------------------------------------------------------------
# Fused 3x3 conv (stride 1, pad 1) + folded BatchNorm + LeakyReLU(0.1) kernel.
# Grid: (B, cout_tiles, m_tiles).  kw is folded into K; only 3 kh taps remain,
# accumulated as a value (no scratch round-trips).
# ----------------------------------------------------------------------------
def _conv_bn_lrelu_kernel(x_ref, w_ref, s_ref, b_ref, o_ref, *, tm, W):
    # x_ref:   ((H+2)*W, K)  bf16, kw folded into K, 1 zero row top/bottom
    # w_ref:   (3, K, tco)   bf16  (one K x tco matrix per kh tap)
    # s_ref/b_ref: (1, tco)  f32 folded BatchNorm affine
    # o_ref:   (tm, tco)     bf16 output block
    base = pl.program_id(2) * tm
    if tm % 8 == 0:
        base = pl.multiple_of(base, 8)
    acc = jnp.dot(x_ref[pl.ds(base, tm), :], w_ref[0],
                  preferred_element_type=jnp.float32)
    acc = acc + jnp.dot(x_ref[pl.ds(base + W, tm), :], w_ref[1],
                        preferred_element_type=jnp.float32)
    acc = acc + jnp.dot(x_ref[pl.ds(base + 2 * W, tm), :], w_ref[2],
                        preferred_element_type=jnp.float32)
    y = acc * s_ref[...] + b_ref[...]                             # folded BN
    o_ref[...] = jnp.where(y > 0.0, y, 0.1 * y).astype(o_ref.dtype)   # LeakyReLU


def conv_bn_lrelu(x, w, scale, bias):
    """x: (B,H,W,Cin), w: (3,3,Cin,Cout), scale/bias: (Cout,) -> (B,H,W,Cout) bf16."""
    B, H, W, cin = x.shape
    cout = w.shape[-1]
    k = 3 * cin
    k_pad = _round_up(k, 32)          # stem: 9 -> 32; deeper layers already aligned

    xb = x.astype(jnp.bfloat16)
    xw = jnp.pad(xb, ((0, 0), (0, 0), (1, 1), (0, 0)))            # width halo
    # Fold the kw taps into channels: x_cat[..., w, kw*Cin + c] = x_pad[..., w+kw, c]
    x_cat = jnp.concatenate(
        [xw[:, :, 0:W, :], xw[:, :, 1:W + 1, :], xw[:, :, 2:W + 2, :]], axis=-1)
    # Height halo (1 zero row top/bottom) + zero-pad K to k_pad.
    x_cat = jnp.pad(x_cat, ((0, 0), (1, 1), (0, 0), (0, k_pad - k)))
    xf = x_cat.reshape(B, (H + 2) * W, k_pad)

    # Weight: (kh, kw, cin, cout) -> (3, 3*cin, cout), matching the channel fold order.
    w3 = jnp.pad(w.astype(jnp.bfloat16).reshape(3, k, cout),
                 ((0, 0), (0, k_pad - k), (0, 0)))
    s2 = scale.reshape(1, cout).astype(jnp.float32)
    b2 = bias.reshape(1, cout).astype(jnp.float32)

    m_out = H * W
    tco = min(cout, 256)
    tm = _pick_tm(m_out, tco)
    grid = (B, cout // tco, m_out // tm)    # m innermost: weight block constant across it

    out = pl.pallas_call(
        functools.partial(_conv_bn_lrelu_kernel, tm=tm, W=W),
        out_shape=jax.ShapeDtypeStruct((B, m_out, cout), jnp.bfloat16),
        grid_spec=pltpu.PrefetchScalarGridSpec(
            num_scalar_prefetch=0,
            grid=grid,
            in_specs=[
                pl.BlockSpec((None, (H + 2) * W, k_pad), lambda b, j, m: (b, 0, 0)),
                pl.BlockSpec((3, k_pad, tco), lambda b, j, m: (0, 0, j)),
                pl.BlockSpec((1, tco), lambda b, j, m: (0, j)),
                pl.BlockSpec((1, tco), lambda b, j, m: (0, j)),
            ],
            out_specs=pl.BlockSpec((None, tm, tco), lambda b, j, m: (b, m, j)),
        ),
        compiler_params=pltpu.CompilerParams(
            dimension_semantics=("parallel", "parallel", "parallel"),
            vmem_limit_bytes=32 * 1024 * 1024),
    )(xf, w3, s2, b2)
    return out.reshape(B, H, W, cout)       # no junk columns; free reshape


def max_pool_2x2(x):
    # TODO(synk): kept as cheap XLA reduction glue rather than fused into the conv.
    B, H, W, C = x.shape
    return x.reshape(B, H // 2, 2, W // 2, 2, C).max(axis=(2, 4))


# ----------------------------------------------------------------------------
# Head: global average pool + fully-connected layer, single Pallas kernel.
# ----------------------------------------------------------------------------
def _head_kernel(x_ref, w_ref, b_ref, o_ref):
    feat = jnp.mean(x_ref[...].astype(jnp.float32), axis=1)          # (B, 1024)
    o_ref[...] = (jnp.dot(feat, w_ref[...], preferred_element_type=jnp.float32)
                  + b_ref[...])


def avgpool_fc(x, fc_w, fc_b):
    B, H, W, C = x.shape
    n_cls = fc_w.shape[-1]
    return pl.pallas_call(
        _head_kernel,
        out_shape=jax.ShapeDtypeStruct((B, n_cls), jnp.float32),
    )(x.reshape(B, H * W, C), fc_w, fc_b.reshape(1, n_cls))


# ----------------------------------------------------------------------------
# Darknet19 parameters (deterministic init) and forward pass.
# ----------------------------------------------------------------------------
_CFG = [
    [(3, 32)],                                                       # layer1 (+pool)
    [(32, 64)],                                                      # layer2 (+pool)
    [(64, 128), (128, 64), (64, 128)],                               # layer3 (+pool)
    [(128, 256), (256, 128), (128, 256)],                            # layer4 (+pool)
    [(256, 512), (512, 256), (256, 512), (512, 256), (256, 512)],    # layer5 (+pool)
    [(512, 1024), (1024, 512), (512, 1024), (1024, 512), (512, 1024)],  # layer6
]


def init_params(key, num_classes):
    # Conv: Kaiming-normal (fan_out, leaky_relu slope 0.01 = PyTorch default).
    # Conv bias: PyTorch default uniform.  BatchNorm: fresh-module inference fold.
    # TODO(synk): training-mode BatchNorm (per-batch statistics) not reproduced;
    #             BN is folded into a per-channel scale/bias (inference semantics).
    eps = 1e-5
    leaky_gain = math.sqrt(2.0 / (1.0 + 0.01 ** 2))
    params = []
    for stage in _CFG:
        stage_p = []
        for cin, cout in stage:
            key, kw, kb = jax.random.split(key, 3)
            std = leaky_gain / math.sqrt(cout * 9)                    # fan_out = cout*3*3
            w = std * jax.random.normal(kw, (3, 3, cin, cout), jnp.float32)
            bound = 1.0 / math.sqrt(cin * 9)
            conv_b = jax.random.uniform(kb, (cout,), jnp.float32, -bound, bound)
            gamma = jnp.ones((cout,), jnp.float32)
            beta = jnp.zeros((cout,), jnp.float32)
            run_mean = jnp.zeros((cout,), jnp.float32)
            run_var = jnp.ones((cout,), jnp.float32)
            scale = gamma / jnp.sqrt(run_var + eps)
            bias = beta + scale * (conv_b - run_mean)
            stage_p.append((w, scale, bias))
        params.append(stage_p)
    key, kw, kb = jax.random.split(key, 3)
    fc_w = (1.0 / math.sqrt(num_classes)) * jax.random.normal(
        kw, (1024, num_classes), jnp.float32)                         # kaiming fan_out, linear
    fb = 1.0 / math.sqrt(1024)
    fc_b = jax.random.uniform(kb, (num_classes,), jnp.float32, -fb, fb)
    return params, fc_w, fc_b


def darknet19_forward(x_nchw, params, fc_w, fc_b):
    x = jnp.transpose(x_nchw, (0, 2, 3, 1))          # NCHW -> NHWC kernel layout
    for stage_idx, stage in enumerate(params):
        for (w, scale, bias) in stage:
            x = conv_bn_lrelu(x, w, scale, bias)
        if stage_idx < 5:                             # layers 1-5 end with MaxPool2d(2,2)
            x = max_pool_2x2(x)
    return avgpool_fc(x, fc_w, fc_b)                  # global avg pool + fc


def _conv_ref(x, w, scale, bias):
    """Plain-JAX reference for one conv block (bf16 inputs, f32 accumulation)."""
    xb = x.astype(jnp.bfloat16).astype(jnp.float32)
    wb = w.astype(jnp.bfloat16).astype(jnp.float32)
    y = jax.lax.conv_general_dilated(
        xb, wb, window_strides=(1, 1), padding="SAME",
        dimension_numbers=("NHWC", "HWIO", "NHWC"),
        precision=jax.lax.Precision.HIGHEST)
    y = y * scale + bias
    y = jnp.where(y > 0, y, 0.1 * y)
    return y.astype(jnp.bfloat16)


if __name__ == "__main__":
    num_classes = 128                                 # small synthetic head
    key = jax.random.PRNGKey(0)
    key, kp, kx = jax.random.split(key, 3)
    params, fc_w, fc_b = init_params(kp, num_classes)

    # Correctness spot-checks against lax.conv: stem block and one deep block.
    xc = jax.random.normal(jax.random.PRNGKey(1), (2, 16, 16, 3), jnp.float32)
    w0, s0, b0 = params[0][0]
    got = conv_bn_lrelu(xc, w0, s0, b0).astype(jnp.float32)
    ref = _conv_ref(xc, w0, s0, b0).astype(jnp.float32)
    assert bool(jnp.allclose(got, ref, rtol=2e-2, atol=2e-2)), "stem conv mismatch"

    xd = 0.5 * jax.random.normal(jax.random.PRNGKey(2), (2, 8, 8, 64), jnp.float32)
    wd, sd, bd = params[2][0]                          # 64 -> 128 conv block
    gotd = conv_bn_lrelu(xd, wd, sd, bd).astype(jnp.float32)
    refd = _conv_ref(xd, wd, sd, bd).astype(jnp.float32)
    assert bool(jnp.allclose(gotd, refd, rtol=2e-2, atol=2e-2)), "deep conv mismatch"

    # Full Darknet19 forward.  Input is NCHW like the PyTorch module.
    x = jax.random.normal(kx, (2, 3, 64, 64), jnp.float32)
    fwd = jax.jit(darknet19_forward)
    out = jax.block_until_ready(fwd(x, params, fc_w, fc_b))
    assert out.shape == (2, num_classes)
    assert bool(jnp.all(jnp.isfinite(out)))
    print("KERNEL_OK")
</pallas_src>

<mosaic_0001>
module attributes {stable_mosaic.version = 11 : i64} {
  func.func @_conv_bn_lrelu_kernel(%arg0: i32, %arg1: i32, %arg2: i32, %arg3: memref<1x288x32xbf16, #tpu.memory_space<vmem>>, %arg4: memref<3x32x32xbf16, #tpu.memory_space<vmem>>, %arg5: memref<1x32xf32, #tpu.memory_space<vmem>>, %arg6: memref<1x32xf32, #tpu.memory_space<vmem>>, %arg7: memref<1x256x32xbf16, #tpu.memory_space<vmem>>) attributes {dimension_semantics = [#tpu.dimension_semantics<parallel>, #tpu.dimension_semantics<parallel>, #tpu.dimension_semantics<parallel>], iteration_bounds = array<i64: 2, 1, 1>, scalar_prefetch = 0 : i64, scratch_operands = 0 : i64, tpu.core_type = #tpu.core_type<tc>, window_params = [{transform_indices = @transform_0, window_bounds = array<i64: 1, 288, 32>}, {transform_indices = @transform_1, window_bounds = array<i64: 3, 32, 32>}, {transform_indices = @transform_2, window_bounds = array<i64: 1, 32>}, {transform_indices = @transform_3, window_bounds = array<i64: 1, 32>}, {transform_indices = @transform_4, window_bounds = array<i64: 1, 256, 32>}]} {
    %c256_i32 = arith.constant 256 : i32
    %0 = arith.muli %arg2, %c256_i32 : i32
    %1 = tpu.assume_multiple %0, 8 : i32
    %c0 = arith.constant 0 : index
    %2 = arith.index_cast %1 : i32 to index
    %c0_0 = arith.constant 0 : index
    %3 = vector.load %arg3[%c0, %2, %c0_0] : memref<1x288x32xbf16, #tpu.memory_space<vmem>>, vector<1x256x32xbf16>
    %4 = vector.shape_cast %3 : vector<1x256x32xbf16> to vector<256x32xbf16>
    %c0_1 = arith.constant 0 : index
    %c0_2 = arith.constant 0 : index
    %c0_3 = arith.constant 0 : index
    %5 = vector.load %arg4[%c0_1, %c0_2, %c0_3] : memref<3x32x32xbf16, #tpu.memory_space<vmem>>, vector<1x32x32xbf16>
    %6 = vector.shape_cast %5 : vector<1x32x32xbf16> to vector<32x32xbf16>
    %cst = arith.constant dense<0.000000e+00> : vector<256x32xf32>
    %7 = tpu.matmul %4, %6, %cst {dimension_numbers = #tpu.dot_dimension_numbers<[1], [0], [0], [1], [0, 0, 1, 1], [], []>} : vector<256x32xbf16>, vector<32x32xbf16>, vector<256x32xf32> -> vector<256x32xf32>
    %c16_i32 = arith.constant 16 : i32
    %8 = arith.addi %1, %c16_i32 : i32
    %c0_4 = arith.constant 0 : index
    %9 = arith.index_cast %8 : i32 to index
    %c0_5 = arith.constant 0 : index
    %10 = vector.load %arg3[%c0_4, %9, %c0_5] : memref<1x288x32xbf16, #tpu.memory_space<vmem>>, vector<1x256x32xbf16>
    %11 = vector.shape_cast %10 : vector<1x256x32xbf16> to vector<256x32xbf16>
    %c1 = arith.constant 1 : index
    %c0_6 = arith.constant 0 : index
    %c0_7 = arith.constant 0 : index
    %12 = vector.load %arg4[%c1, %c0_6, %c0_7] : memref<3x32x32xbf16, #tpu.memory_space<vmem>>, vector<1x32x32xbf16>
    %13 = vector.shape_cast %12 : vector<1x32x32xbf16> to vector<32x32xbf16>
    %cst_8 = arith.constant dense<0.000000e+00> : vector<256x32xf32>
    %14 = tpu.matmul %11, %13, %cst_8 {dimension_numbers = #tpu.dot_dimension_numbers<[1], [0], [0], [1], [0, 0, 1, 1], [], []>} : vector<256x32xbf16>, vector<32x32xbf16>, vector<256x32xf32> -> vector<256x32xf32>
    %15 = arith.addf %7, %14 : vector<256x32xf32>
    %c32_i32 = arith.constant 32 : i32
    %16 = arith.addi %1, %c32_i32 : i32
    %c0_9 = arith.constant 0 : index
    %17 = arith.index_cast %16 : i32 to index
    %c0_10 = arith.constant 0 : index
    %18 = vector.load %arg3[%c0_9, %17, %c0_10] : memref<1x288x32xbf16, #tpu.memory_space<vmem>>, vector<1x256x32xbf16>
    %19 = vector.shape_cast %18 : vector<1x256x32xbf16> to vector<256x32xbf16>
    %c2 = arith.constant 2 : index
    %c0_11 = arith.constant 0 : index
    %c0_12 = arith.constant 0 : index
    %20 = vector.load %arg4[%c2, %c0_11, %c0_12] : memref<3x32x32xbf16, #tpu.memory_space<vmem>>, vector<1x32x32xbf16>
    %21 = vector.shape_cast %20 : vector<1x32x32xbf16> to vector<32x32xbf16>
    %cst_13 = arith.constant dense<0.000000e+00> : vector<256x32xf32>
    %22 = tpu.matmul %19, %21, %cst_13 {dimension_numbers = #tpu.dot_dimension_numbers<[1], [0], [0], [1], [0, 0, 1, 1], [], []>} : vector<256x32xbf16>, vector<32x32xbf16>, vector<256x32xf32> -> vector<256x32xf32>
    %23 = arith.addf %15, %22 : vector<256x32xf32>
    %c0_14 = arith.constant 0 : index
    %c0_15 = arith.constant 0 : index
    %24 = vector.load %arg5[%c0_14, %c0_15] : memref<1x32xf32, #tpu.memory_space<vmem>>, vector<1x32xf32>
    %25 = vector.broadcast %24 : vector<1x32xf32> to vector<256x32xf32>
    %26 = arith.mulf %23, %25 : vector<256x32xf32>
    %c0_16 = arith.constant 0 : index
    %c0_17 = arith.constant 0 : index
    %27 = vector.load %arg6[%c0_16, %c0_17] : memref<1x32xf32, #tpu.memory_space<vmem>>, vector<1x32xf32>
    %28 = vector.broadcast %27 : vector<1x32xf32> to vector<256x32xf32>
    %29 = arith.addf %26, %28 : vector<256x32xf32>
    %cst_18 = arith.constant 0.000000e+00 : f32
    %30 = vector.broadcast %cst_18 : f32 to vector<256x32xf32>
    %31 = arith.cmpf ogt, %29, %30 : vector<256x32xf32>
    %cst_19 = arith.constant 1.000000e-01 : f32
    %32 = vector.broadcast %cst_19 : f32 to vector<256x32xf32>
    %33 = arith.mulf %32, %29 : vector<256x32xf32>
    %34 = arith.select %31, %29, %33 : vector<256x32xi1>, vector<256x32xf32>
    %35 = arith.truncf %34 : vector<256x32xf32> to vector<256x32xbf16>
    %c0_20 = arith.constant 0 : index
    %c0_21 = arith.constant 0 : index
    %c0_22 = arith.constant 0 : index
    %36 = vector.load %arg7[%c0_20, %c0_21, %c0_22] : memref<1x256x32xbf16, #tpu.memory_space<vmem>>, vector<1x256x32xbf16>
    %37 = vector.shape_cast %36 : vector<1x256x32xbf16> to vector<256x32xbf16>
    %38 = vector.shape_cast %35 : vector<256x32xbf16> to vector<1x256x32xbf16>
    tpu.vector_store %arg7[%c0_20, %c0_21, %c0_22], %38 {strides = array<i32>} : memref<1x256x32xbf16, #tpu.memory_space<vmem>>, vector<1x256x32xbf16>,
    return
  }
  func.func @transform_0(%arg0: i32, %arg1: i32, %arg2: i32) -> (i32, i32, i32) {
    %c0_i32 = arith.constant 0 : i32
    %c0_i32_0 = arith.constant 0 : i32
    %c0_i32_1 = arith.constant 0 : i32
    return %arg0, %c0_i32, %c0_i32_0 : i32, i32, i32
  }
  func.func @transform_1(%arg0: i32, %arg1: i32, %arg2: i32) -> (i32, i32, i32) {
    %c0_i32 = arith.constant 0 : i32
    %c0_i32_0 = arith.constant 0 : i32
    %c0_i32_1 = arith.constant 0 : i32
    return %c0_i32, %c0_i32_0, %arg1 : i32, i32, i32
  }
  func.func @transform_2(%arg0: i32, %arg1: i32, %arg2: i32) -> (i32, i32) {
    %c0_i32 = arith.constant 0 : i32
    %c0_i32_0 = arith.constant 0 : i32
    return %c0_i32, %arg1 : i32, i32
  }
  func.func @transform_3(%arg0: i32, %arg1: i32, %arg2: i32) -> (i32, i32) {
    %c0_i32 = arith.constant 0 : i32
    %c0_i32_0 = arith.constant 0 : i32
    return %c0_i32, %arg1 : i32, i32
  }
  func.func @transform_4(%arg0: i32, %arg1: i32, %arg2: i32) -> (i32, i32, i32) {
    %c0_i32 = arith.constant 0 : i32
    return %arg0, %arg2, %arg1 : i32, i32, i32
  }
}

</mosaic_0001>

<llo_original>
// kernel: tpu_custom_call.1
$region0: #{tpu_custom_call.1}
  #allocation0 [shape = 'u32[]', space=smem, size = 0x4, offset = 0x4, fixed_abs, tag = 'smem constant byte address 0x4 - core index']
  #allocation1 [shape = 'u32[72,128]{1,0:T(1,128)}', space=vmem, size = 0x9000, scoped, tag = 'internal scratch']
  %s0 = inlined_call_operand.vmem [shape: bf16[2,288,32], index: 0, kind: input, shape index: {}]
  %s1 = inlined_call_operand.vmem [shape: bf16[3,32,32], index: 1, kind: input, shape index: {}]
  %s2 = inlined_call_operand.vmem [shape: f32[1,32], index: 2, kind: input, shape index: {}]
  %s3 = inlined_call_operand.vmem [shape: f32[1,32], index: 3, kind: input, shape index: {}]
  %s4 = inlined_call_operand.vmem [shape: bf16[2,256,32], index: 4, kind: output, shape index: {}]
  %s5 = sld [smem:[#allocation0]]
  $region49: #{tpu_custom_call.1} parent=0
    _
  %s7 = ssub.s32 1, %s5
  %s8 = scalar_select 0, %s7, %s5
  loop: start=0, step=1, limit=4
  $region2: #{tpu_custom_call.1} parent=0 // loop_pre_header
    _
  $region3: #{tpu_custom_call.1} parent=0 // loop_header
    %s10 = sphi 0, %s14
    %p11 = scmp.ge.s32.totalorder %s10, 4
    %s17 = sphi 0, %s36
    %s18 = sphi 0, %s32
    %s19 = sphi 0, %s28
    %s20 = sphi 0, %s17
    %s21 = sphi 0, %s18
    %s22 = sphi 0, %s19
    %s23 = sphi 0, %s20
    %s24 = sphi 0, %s21
    %s25 = sphi 0, %s22
    %s39 = sphi 0, %s41
    %s42 = sphi 0, %s39
    %s43 = sphi 0, %s42
    %s59 = sphi 0, %s43
    %s65 = sphi 0, %s67
    %s68 = sphi 0, %s65
    %s69 = sphi 0, %s68
    %s85 = sphi 0, %s69
    %s91 = sphi 0, %s93
    %s94 = sphi 0, %s91
    %s95 = sphi 0, %s94
    %s111 = sphi 0, %s95
    %s117 = sphi 0, %s119
    %s120 = sphi 0, %s117
    %s121 = sphi 0, %s120
    %s137 = sphi 0, %s121
    %s147 = sphi 0, %s149
    %s150 = sphi 0, %s147
    %s151 = sphi 0, %s150
    %s167 = sphi 0, %s151
  $region4: #{tpu_custom_call.1} parent=0 // loop_header_branch
    %13 = sbr.rel (%p11) target = $region8
  $region5: #{tpu_custom_call.1} parent=0 // loop_body
    %s15 = ssub.s32 %s10, 1
    %s16 = ssub.s32 %s10, 2
    %s26 = sadd.s32 1, %s19
    %p27 = scmp.ge.s32.totalorder %s26, 1
    %s28 = scalar_select %p27, 0, %s26
    %s29 = sadd.s32 1, %s18
    %s30 = scalar_select %p27, %s29, %s18
    %p31 = scmp.ge.s32.totalorder %s30, 1
    %s32 = scalar_select %p31, 0, %s30
    %s33 = sadd.s32 1, %s17
    %s34 = scalar_select %p31, %s33, %s17
    %p35 = scmp.ge.s32.totalorder %s34, 2
    %s36 = scalar_select %p35, 0, %s34
    %s37 = ssub.s32 %s17, %s36
    %p38 = scmp.eq.s32.totalorder %s37, 0
    %s40 = sadd.s32 %s39, 1
    %s41 = scalar_select %p38, %s39, %s40
    %p44 = pneg %p38
    %p45 = scmp.eq.s32.totalorder %s10, 1
    %p46 = por %p44, %p45
    %p47 = scmp.ne.s32.totalorder %s39, %s42
    %p48 = scmp.eq.s32.totalorder %s10, 0
    %p49 = por %p47, %p48
    %p50 = scmp.ne.s32.totalorder %s39, %s42
    %p51 = scmp.eq.s32.totalorder %s15, 1
    %p52 = por %p50, %p51
    %p53 = scmp.ne.s32.totalorder %s42, %s43
    %p54 = scmp.eq.s32.totalorder %s15, 0
    %p55 = por %p53, %p54
    %p56 = scmp.ne.s32.totalorder %s42, %s43
    %p57 = scmp.eq.s32.totalorder %s16, 1
    %p58 = por %p56, %p57
    %p60 = scmp.ne.s32.totalorder %s43, %s59
    %p61 = scmp.eq.s32.totalorder %s16, 0
    %p62 = por %p60, %p61
    %s63 = ssub.s32 %s18, %s32
    %p64 = scmp.eq.s32.totalorder %s63, 0
    %s66 = sadd.s32 %s65, 1
    %s67 = scalar_select %p64, %s65, %s66
    %p70 = pneg %p64
    %p71 = scmp.eq.s32.totalorder %s10, 1
    %p72 = por %p70, %p71
    %p73 = scmp.ne.s32.totalorder %s65, %s68
    %p74 = scmp.eq.s32.totalorder %s10, 0
    %p75 = por %p73, %p74
    %p76 = scmp.ne.s32.totalorder %s65, %s68
    %p77 = scmp.eq.s32.totalorder %s15, 1
    %p78 = por %p76, %p77
    %p79 = scmp.ne.s32.totalorder %s68, %s69
    %p80 = scmp.eq.s32.totalorder %s15, 0
    %p81 = por %p79, %p80
    %p82 = scmp.ne.s32.totalorder %s68, %s69
    %p83 = scmp.eq.s32.totalorder %s16, 1
    %p84 = por %p82, %p83
    %p86 = scmp.ne.s32.totalorder %s69, %s85
    %p87 = scmp.eq.s32.totalorder %s16, 0
    %p88 = por %p86, %p87
    %s89 = ssub.s32 %s18, %s32
    %p90 = scmp.eq.s32.totalorder %s89, 0
    %s92 = sadd.s32 %s91, 1
    %s93 = scalar_select %p90, %s91, %s92
    %p96 = pneg %p90
    %p97 = scmp.eq.s32.totalorder %s10, 1
    %p98 = por %p96, %p97
    %p99 = scmp.ne.s32.totalorder %s91, %s94
    %p100 = scmp.eq.s32.totalorder %s10, 0
    %p101 = por %p99, %p100
    %p102 = scmp.ne.s32.totalorder %s91, %s94
    %p103 = scmp.eq.s32.totalorder %s15, 1
    %p104 = por %p102, %p103
    %p105 = scmp.ne.s32.totalorder %s94, %s95
    %p106 = scmp.eq.s32.totalorder %s15, 0
    %p107 = por %p105, %p106
    %p108 = scmp.ne.s32.totalorder %s94, %s95
    %p109 = scmp.eq.s32.totalorder %s16, 1
    %p110 = por %p108, %p109
    %p112 = scmp.ne.s32.totalorder %s95, %s111
    %p113 = scmp.eq.s32.totalorder %s16, 0
    %p114 = por %p112, %p113
    %s115 = ssub.s32 %s18, %s32
    %p116 = scmp.eq.s32.totalorder %s115, 0
    %s118 = sadd.s32 %s117, 1
    %s119 = scalar_select %p116, %s117, %s118
    %p122 = pneg %p116
    %p123 = scmp.eq.s32.totalorder %s10, 1
    %p124 = por %p122, %p123
    %p125 = scmp.ne.s32.totalorder %s117, %s120
    %p126 = scmp.eq.s32.totalorder %s10, 0
    %p127 = por %p125, %p126
    %p128 = scmp.ne.s32.totalorder %s117, %s120
    %p129 = scmp.eq.s32.totalorder %s15, 1
    %p130 = por %p128, %p129
    %p131 = scmp.ne.s32.totalorder %s120, %s121
    %p132 = scmp.eq.s32.totalorder %s15, 0
    %p133 = por %p131, %p132
    %p134 = scmp.ne.s32.totalorder %s120, %s121
    %p135 = scmp.eq.s32.totalorder %s16, 1
    %p136 = por %p134, %p135
    %p138 = scmp.ne.s32.totalorder %s121, %s137
    %p139 = scmp.eq.s32.totalorder %s16, 0
    %p140 = por %p138, %p139
    %s141 = ssub.s32 %s17, %s36
    %s142 = ssub.s32 %s19, %s28
    %s143 = sor.u32 %s141, %s142
    %s144 = ssub.s32 %s18, %s32
    %s145 = sor.u32 %s143, %s144
    %p146 = scmp.eq.s32.totalorder %s145, 0
    %s148 = sadd.s32 %s147, 1
    %s149 = scalar_select %p146, %s147, %s148
    %p152 = pneg %p146
    %p153 = scmp.eq.s32.totalorder %s10, 1
    %p154 = por %p152, %p153
    %p155 = scmp.ne.s32.totalorder %s147, %s150
    %p156 = scmp.eq.s32.totalorder %s10, 0
    %p157 = por %p155, %p156
    %p158 = scmp.ne.s32.totalorder %s147, %s150
    %p159 = scmp.eq.s32.totalorder %s15, 1
    %p160 = por %p158, %p159
    %p161 = scmp.ne.s32.totalorder %s150, %s151
    %p162 = scmp.eq.s32.totalorder %s15, 0
    %p163 = por %p161, %p162
    %p164 = scmp.ne.s32.totalorder %s150, %s151
    %p165 = scmp.eq.s32.totalorder %s16, 1
    %p166 = por %p164, %p165
    %p168 = scmp.ne.s32.totalorder %s151, %s167
    %p169 = scmp.eq.s32.totalorder %s16, 0
    %p170 = por %p168, %p169
    %p171 = scmp.le.s32.totalorder 1, %s10
    %p172 = scmp.lt.s32.totalorder %s10, 3
    %p173 = pnand %p171, %p172
    %p174 = pneg %p173
    // Predicated region
    $region9: #{tpu_custom_call.1} parent=5 // pred_check
      _
    $region10: #{tpu_custom_call.1} parent=5 // pred_check_branch
      %176 = sbr.rel (%p173) target = $region12
    $region11: #{tpu_custom_call.1} parent=5 // pred_region
      %s177 = ssub.s32 %s10, 1
      // Predicated region
      $region13: #{tpu_custom_call.1} parent=11 // pred_check
        %p178 = pneg %p81
      $region14: #{tpu_custom_call.1} parent=11 // pred_check_branch
        %180 = sbr.rel (%p178) target = $region16
      $region15: #{tpu_custom_call.1} parent=11 // pred_region
        %p181 = scmp.lt.s32.totalorder %s21, 0
        %s182 = scalar_select %p181, %s21, 0
        %s183 = smul.addr %s182, 4
        %s184 = scalar_lea.vmem %s1, %s183
      $region16: #{tpu_custom_call.1} parent=11 // pred_fallthru
        _
      // Predicated region
      $region17: #{tpu_custom_call.1} parent=11 // pred_check
        %p185 = pneg %p107
      $region18: #{tpu_custom_call.1} parent=11 // pred_check_branch
        %187 = sbr.rel (%p185) target = $region20
      $region19: #{tpu_custom_call.1} parent=11 // pred_region
        %p188 = scmp.lt.s32.totalorder %s21, 0
        %s189 = scalar_select %p188, %s21, 0
        %s190 = scalar_lea.vmem %s2, %s189
      $region20: #{tpu_custom_call.1} parent=11 // pred_fallthru
        _
      // Predicated region
      $region21: #{tpu_custom_call.1} parent=11 // pred_check
        %p191 = pneg %p133
      $region22: #{tpu_custom_call.1} parent=11 // pred_check_branch
        %193 = sbr.rel (%p191) target = $region24
      $region23: #{tpu_custom_call.1} parent=11 // pred_region
        %p194 = scmp.lt.s32.totalorder %s21, 0
        %s195 = scalar_select %p194, %s21, 0
        %s196 = scalar_lea.vmem %s3, %s195
      $region24: #{tpu_custom_call.1} parent=11 // pred_fallthru
        _
    $region12: #{tpu_custom_call.1} parent=5 // pred_fallthru
      _
    %p197 = scmp.lt.s32.totalorder %s10, 2
    // Predicated region
    $region25: #{tpu_custom_call.1} parent=5 // pred_check
      %p198 = pneg %p197
    $region26: #{tpu_custom_call.1} parent=5 // pred_check_branch
      %200 = sbr.rel (%p198) target = $region28
    $region27: #{tpu_custom_call.1} parent=5 // pred_region
      // Predicated region
      $region29: #{tpu_custom_call.1} parent=27 // pred_check
        %p201 = pneg %p49
      $region30: #{tpu_custom_call.1} parent=27 // pred_check_branch
        %203 = sbr.rel (%p201) target = $region32
      $region31: #{tpu_custom_call.1} parent=27 // pred_region
        %p204 = scmp.lt.s32.totalorder %s17, 1
        %s205 = scalar_select %p204, %s17, 1
        %s206 = smul.addr %s205, 36
        %s207 = smul.addr %s206, 4
        %s208 = scalar_lea.vmem %s0, %s207
      $region32: #{tpu_custom_call.1} parent=27 // pred_fallthru
        _
    $region28: #{tpu_custom_call.1} parent=5 // pred_fallthru
      _
    %p209 = scmp.le.s32.totalorder 1, %s10
    %p210 = scmp.lt.s32.totalorder %s10, 3
    %p211 = pnand %p209, %p210
    %p212 = pneg %p211
    // Predicated region
    $region33: #{tpu_custom_call.1} parent=5 // pred_check
      _
    $region34: #{tpu_custom_call.1} parent=5 // pred_check_branch
      %214 = sbr.rel (%p211) target = $region36
    $region35: #{tpu_custom_call.1} parent=5 // pred_region
      %s215 = ssub.s32 %s10, 1
      %p216 = scmp.lt.s32.totalorder %s20, 1
      %s217 = scalar_select %p216, %s20, 1
      %s218 = smul.addr %s217, 36
      %s219 = smul.addr %s218, 4
      %s220 = scalar_lea.vmem %s0, %s219
      %p221 = pneg %p55
      %p222 = pneg %p52
      %p223 = scmp.lt.s32.totalorder %s21, 0
      %s224 = scalar_select %p223, %s21, 0
      %s225 = smul.addr %s224, 4
      %s226 = scalar_lea.vmem %s1, %s225
      %p227 = pneg %p81
      %p228 = pneg %p78
      %p229 = scmp.lt.s32.totalorder %s21, 0
      %s230 = scalar_select %p229, %s21, 0
      %s231 = scalar_lea.vmem %s2, %s230
      %p232 = pneg %p107
      %p233 = pneg %p104
      %p234 = scmp.lt.s32.totalorder %s21, 0
      %s235 = scalar_select %p234, %s21, 0
      %s236 = scalar_lea.vmem %s3, %s235
      %p237 = pneg %p133
      %p238 = pneg %p130
      %p239 = pneg %p163
      %p240 = pneg %p160
      %s241 = smul.u32 32, %s22
      %p242 = scmp.lt.s32.totalorder %s20, 1
      %s243 = scalar_select %p242, %s20, 1
      %p244 = scmp.lt.s32.totalorder %s241, 31
      %s245 = scalar_select %p244, %s241, 31
      %p246 = scmp.lt.s32.totalorder %s21, 0
      %s247 = scalar_select %p246, %s21, 0
      %s248 = sadd.s32 %s247, %s245
      %s249 = smul.addr %s243, 32
      %s250 = sadd.s32 %s248, %s249
      %s251 = smul.addr %s250, 4
      %s252 = scalar_lea.vmem %s4, %s251
      %p253 = scmp.lt.s32.totalorder %s20, 1
      %s254 = scalar_select %p253, %s20, 1
      %s255 = smul.addr %s254, 36
      %s256 = smul.addr %s255, 4
      %s257 = scalar_lea.vmem %s0, %s256
      %p258 = scmp.lt.s32.totalorder %s21, 0
      %s259 = scalar_select %p258, %s21, 0
      %s260 = smul.addr %s259, 4
      %s261 = scalar_lea.vmem %s1, %s260
      %p262 = scmp.lt.s32.totalorder %s21, 0
      %s263 = scalar_select %p262, %s21, 0
      %s264 = scalar_lea.vmem %s2, %s263
      %p265 = scmp.lt.s32.totalorder %s21, 0
      %s266 = scalar_select %p265, %s21, 0
      %s267 = scalar_lea.vmem %s3, %s266
      %s268 = smul.u32 32, %s22
      %p269 = scmp.lt.s32.totalorder %s20, 1
      %s270 = scalar_select %p269, %s20, 1
      %p271 = scmp.lt.s32.totalorder %s268, 31
      %s272 = scalar_select %p271, %s268, 31
      %p273 = scmp.lt.s32.totalorder %s21, 0
      %s274 = scalar_select %p273, %s21, 0
      %s275 = sadd.s32 %s274, %s272
      %s276 = smul.addr %s270, 32
      %s277 = sadd.s32 %s275, %s276
      %s278 = smul.addr %s277, 4
      %s279 = scalar_lea.vmem %s4, %s278
      %s280 = smul.u32 32, %s22
      %s282 = smul.u32 %s22, 256
      %s283 = sshra.s32 %s282, 3
      %s284 = sand.u32 %s282, 7
      %s285 = smul.addr %s283, 4
      %s286 = scalar_lea.vmem %s257, %s285
      %v287 = vld [vmem:[%s286] sm:$0xf]
      %v288 = vld [vmem:[%s286 + $0x4] sm:$0xf]
      %v289 = vld [vmem:[%s286 + $0x8] sm:$0xf]
      %v290 = vld [vmem:[%s286 + $0xc] sm:$0xf]
      %v291 = vld [vmem:[%s286 + $0x10] sm:$0xf]
      %v292 = vld [vmem:[%s286 + $0x14] sm:$0xf]
      %v293 = vld [vmem:[%s286 + $0x18] sm:$0xf]
      %v294 = vld [vmem:[%s286 + $0x1c] sm:$0xf]
      %v295 = vld [vmem:[%s286 + $0x20] sm:$0xf]
      %v296 = vld [vmem:[%s286 + $0x24] sm:$0xf]
      %v297 = vld [vmem:[%s286 + $0x28] sm:$0xf]
      %v298 = vld [vmem:[%s286 + $0x2c] sm:$0xf]
      %v299 = vld [vmem:[%s286 + $0x30] sm:$0xf]
      %v300 = vld [vmem:[%s286 + $0x34] sm:$0xf]
      %v301 = vld [vmem:[%s286 + $0x38] sm:$0xf]
      %v302 = vld [vmem:[%s286 + $0x3c] sm:$0xf]
      %v303 = vld [vmem:[%s286 + $0x40] sm:$0xf]
      %v304 = vld [vmem:[%s286 + $0x44] sm:$0xf]
      %v305 = vld [vmem:[%s286 + $0x48] sm:$0xf]
      %v306 = vld [vmem:[%s286 + $0x4c] sm:$0xf]
      %v307 = vld [vmem:[%s286 + $0x50] sm:$0xf]
      %v308 = vld [vmem:[%s286 + $0x54] sm:$0xf]
      %v309 = vld [vmem:[%s286 + $0x58] sm:$0xf]
      %v310 = vld [vmem:[%s286 + $0x5c] sm:$0xf]
      %v311 = vld [vmem:[%s286 + $0x60] sm:$0xf]
      %v312 = vld [vmem:[%s286 + $0x64] sm:$0xf]
      %v313 = vld [vmem:[%s286 + $0x68] sm:$0xf]
      %v314 = vld [vmem:[%s286 + $0x6c] sm:$0xf]
      %v315 = vld [vmem:[%s286 + $0x70] sm:$0xf]
      %v316 = vld [vmem:[%s286 + $0x74] sm:$0xf]
      %v317 = vld [vmem:[%s286 + $0x78] sm:$0xf]
      %v318 = vld [vmem:[%s286 + $0x7c] sm:$0xf]
      %v319 = vld [vmem:[%s261] sm:$0xf]
      %v320 = vld [vmem:[%s261 + $0x4] sm:$0xf]
      %v321 = vld [vmem:[%s261 + $0x8] sm:$0xf]
      %v322 = vld [vmem:[%s261 + $0xc] sm:$0xf]
      %s323 = sadd.s32 %s282, 16
      %s324 = sshra.s32 %s323, 3
      %s325 = sand.u32 %s323, 7
      %s326 = smul.addr %s324, 4
      %s327 = scalar_lea.vmem %s257, %s326
      %v328 = vld [vmem:[%s327] sm:$0xf]
      %v329 = vld [vmem:[%s327 + $0x4] sm:$0xf]
      %v330 = vld [vmem:[%s327 + $0x8] sm:$0xf]
      %v331 = vld [vmem:[%s327 + $0xc] sm:$0xf]
      %v332 = vld [vmem:[%s327 + $0x10] sm:$0xf]
      %v333 = vld [vmem:[%s327 + $0x14] sm:$0xf]
      %v334 = vld [vmem:[%s327 + $0x18] sm:$0xf]
      %v335 = vld [vmem:[%s327 + $0x1c] sm:$0xf]
      %v336 = vld [vmem:[%s327 + $0x20] sm:$0xf]
      %v337 = vld [vmem:[%s327 + $0x24] sm:$0xf]
      %v338 = vld [vmem:[%s327 + $0x28] sm:$0xf]
      %v339 = vld [vmem:[%s327 + $0x2c] sm:$0xf]
      %v340 = vld [vmem:[%s327 + $0x30] sm:$0xf]
      %v341 = vld [vmem:[%s327 + $0x34] sm:$0xf]
      %v342 = vld [vmem:[%s327 + $0x38] sm:$0xf]
      %v343 = vld [vmem:[%s327 + $0x3c] sm:$0xf]
      %v344 = vld [vmem:[%s327 + $0x40] sm:$0xf]
      %v345 = vld [vmem:[%s327 + $0x44] sm:$0xf]
      %v346 = vld [vmem:[%s327 + $0x48] sm:$0xf]
      %v347 = vld [vmem:[%s327 + $0x4c] sm:$0xf]
      %v348 = vld [vmem:[%s327 + $0x50] sm:$0xf]
      %v349 = vld [vmem:[%s327 + $0x54] sm:$0xf]
      %v350 = vld [vmem:[%s327 + $0x58] sm:$0xf]
      %v351 = vld [vmem:[%s327 + $0x5c] sm:$0xf]
      %v352 = vld [vmem:[%s327 + $0x60] sm:$0xf]
      %v353 = vld [vmem:[%s327 + $0x64] sm:$0xf]
      %v354 = vld [vmem:[%s327 + $0x68] sm:$0xf]
      %v355 = vld [vmem:[%s327 + $0x6c] sm:$0xf]
      %v356 = vld [vmem:[%s327 + $0x70] sm:$0xf]
      %v357 = vld [vmem:[%s327 + $0x74] sm:$0xf]
      %v358 = vld [vmem:[%s327 + $0x78] sm:$0xf]
      %v359 = vld [vmem:[%s327 + $0x7c] sm:$0xf]
      %s360 = scalar_lea.vmem %s261, 16
      %v361 = vld [vmem:[%s360] sm:$0xf]
      %v362 = vld [vmem:[%s360 + $0x4] sm:$0xf]
      %v363 = vld [vmem:[%s360 + $0x8] sm:$0xf]
      %v364 = vld [vmem:[%s360 + $0xc] sm:$0xf]
      %v397 = vunpack.c.l.b16 %v328
      %v398 = vunpack.c.l.b16 %v329
      %v399 = vunpack.c.l.b16 %v330
      %v400 = vunpack.c.l.b16 %v331
      %v401 = vunpack.c.l.b16 %v332
      %v402 = vunpack.c.l.b16 %v333
      %v403 = vunpack.c.l.b16 %v334
      %v404 = vunpack.c.l.b16 %v335
      %v405 = vunpack.c.l.b16 %v336
      %v406 = vunpack.c.l.b16 %v337
      %v407 = vunpack.c.l.b16 %v338
      %v408 = vunpack.c.l.b16 %v339
      %v409 = vunpack.c.l.b16 %v340
      %v410 = vunpack.c.l.b16 %v341
      %v411 = vunpack.c.l.b16 %v342
      %v412 = vunpack.c.l.b16 %v343
      %v413 = vunpack.c.l.b16 %v344
      %v414 = vunpack.c.l.b16 %v345
      %v415 = vunpack.c.l.b16 %v346
      %v416 = vunpack.c.l.b16 %v347
      %v417 = vunpack.c.l.b16 %v348
      %v418 = vunpack.c.l.b16 %v349
      %v419 = vunpack.c.l.b16 %v350
      %v420 = vunpack.c.l.b16 %v351
      %v421 = vunpack.c.l.b16 %v352
      %v422 = vunpack.c.l.b16 %v353
      %v423 = vunpack.c.l.b16 %v354
      %v424 = vunpack.c.l.b16 %v355
      %v425 = vunpack.c.l.b16 %v356
      %v426 = vunpack.c.l.b16 %v357
      %v427 = vunpack.c.l.b16 %v358
      %v428 = vunpack.c.l.b16 %v359
      %v429 = vpack.c.b16 %v398, %v397
      %v430 = vpack.c.b16 %v400, %v399
      %v431 = vpack.c.b16 %v402, %v401
      %v432 = vpack.c.b16 %v404, %v403
      %v433 = vpack.c.b16 %v406, %v405
      %v434 = vpack.c.b16 %v408, %v407
      %v435 = vpack.c.b16 %v410, %v409
      %v436 = vpack.c.b16 %v412, %v411
      %v437 = vpack.c.b16 %v414, %v413
      %v438 = vpack.c.b16 %v416, %v415
      %v439 = vpack.c.b16 %v418, %v417
      %v440 = vpack.c.b16 %v420, %v419
      %v441 = vpack.c.b16 %v422, %v421
      %v442 = vpack.c.b16 %v424, %v423
      %v443 = vpack.c.b16 %v426, %v425
      %v444 = vpack.c.b16 %v428, %v427
      %v449 = vunpack.c.l.b16 %v361
      %v450 = vunpack.c.l.b16 %v362
      %v451 = vunpack.c.l.b16 %v363
      %v452 = vunpack.c.l.b16 %v364
      %v453 = vpack.c.b16 %v450, %v449
      %v454 = vpack.c.b16 %v452, %v451
      %vm457 = vcmask 261120
      %v459 = vsel %vm457, %v429, 0
      %v462 = vsel %vm457, %v430, 0
      %v465 = vsel %vm457, %v431, 0
      %v468 = vsel %vm457, %v432, 0
      %v471 = vsel %vm457, %v433, 0
      %v474 = vsel %vm457, %v434, 0
      %v477 = vsel %vm457, %v435, 0
      %v480 = vsel %vm457, %v436, 0
      %v483 = vsel %vm457, %v437, 0
      %v486 = vsel %vm457, %v438, 0
      %v489 = vsel %vm457, %v439, 0
      %v492 = vsel %vm457, %v440, 0
      %v495 = vsel %vm457, %v441, 0
      %v498 = vsel %vm457, %v442, 0
      %v501 = vsel %vm457, %v443, 0
      %v504 = vsel %vm457, %v444, 0
      %506 = vmatpush.bf16.msra.mxu0 0
      %507 = vmatpush.bf16.msra.mxu0 0
      %508 = vmatpush.bf16.msra.mxu0 0
      %509 = vmatpush.bf16.msra.mxu0 0
      %510 = vmatpush.bf16.msra.mxu0 0
      %511 = vmatpush.bf16.msra.mxu0 0
      %512 = vmatpush.bf16.msra.mxu0 %v454
      %513 = vmatpush.bf16.msra.mxu0 %v453
      %514 = vmatmul.bf16.gmra.mxu0 %v459
      %v515 = vpop.f32.mrf.mxu0
      %v516 = vadd.f32 0.0, %v515
      %v517 = vpop.f32.mrf.mxu0
      %v518 = vadd.f32 0.0, %v517
      %519 = vmatmul.bf16.gmra.mxu0 %v462
      %v520 = vpop.f32.mrf.mxu0
      %v521 = vadd.f32 0.0, %v520
      %v522 = vpop.f32.mrf.mxu0
      %v523 = vadd.f32 0.0, %v522
      %524 = vmatmul.bf16.gmra.mxu0 %v465
      %v525 = vpop.f32.mrf.mxu0
      %v526 = vadd.f32 0.0, %v525
      %v527 = vpop.f32.mrf.mxu0
      %v528 = vadd.f32 0.0, %v527
      %529 = vmatmul.bf16.gmra.mxu0 %v468
      %v530 = vpop.f32.mrf.mxu0
      %v531 = vadd.f32 0.0, %v530
      %v532 = vpop.f32.mrf.mxu0
      %v533 = vadd.f32 0.0, %v532
      %534 = vmatmul.bf16.gmra.mxu0 %v471
      %v535 = vpop.f32.mrf.mxu0
      %v536 = vadd.f32 0.0, %v535
      %v537 = vpop.f32.mrf.mxu0
      %v538 = vadd.f32 0.0, %v537
      %539 = vmatmul.bf16.gmra.mxu0 %v474
      %v540 = vpop.f32.mrf.mxu0
      %v541 = vadd.f32 0.0, %v540
      %v542 = vpop.f32.mrf.mxu0
      %v543 = vadd.f32 0.0, %v542
      %544 = vmatmul.bf16.gmra.mxu0 %v477
      %v545 = vpop.f32.mrf.mxu0
      %v546 = vadd.f32 0.0, %v545
      %v547 = vpop.f32.mrf.mxu0
      %v548 = vadd.f32 0.0, %v547
      %549 = vmatmul.bf16.gmra.mxu0 %v480
      %v550 = vpop.f32.mrf.mxu0
      %v551 = vadd.f32 0.0, %v550
      %v552 = vpop.f32.mrf.mxu0
      %v553 = vadd.f32 0.0, %v552
      %554 = vmatmul.bf16.gmra.mxu0 %v483
      %v555 = vpop.f32.mrf.mxu0
      %v556 = vadd.f32 0.0, %v555
      %v557 = vpop.f32.mrf.mxu0
      %v558 = vadd.f32 0.0, %v557
      %559 = vmatmul.bf16.gmra.mxu0 %v486
      %v560 = vpop.f32.mrf.mxu0
      %v561 = vadd.f32 0.0, %v560
      %v562 = vpop.f32.mrf.mxu0
      %v563 = vadd.f32 0.0, %v562
      %564 = vmatmul.bf16.gmra.mxu0 %v489
      %v565 = vpop.f32.mrf.mxu0
      %v566 = vadd.f32 0.0, %v565
      %v567 = vpop.f32.mrf.mxu0
      %v568 = vadd.f32 0.0, %v567
      %569 = vmatmul.bf16.gmra.mxu0 %v492
      %v570 = vpop.f32.mrf.mxu0
      %v571 = vadd.f32 0.0, %v570
      %v572 = vpop.f32.mrf.mxu0
      %v573 = vadd.f32 0.0, %v572
      %574 = vmatmul.bf16.gmra.mxu0 %v495
      %v575 = vpop.f32.mrf.mxu0
      %v576 = vadd.f32 0.0, %v575
      %v577 = vpop.f32.mrf.mxu0
      %v578 = vadd.f32 0.0, %v577
      %579 = vmatmul.bf16.gmra.mxu0 %v498
      %v580 = vpop.f32.mrf.mxu0
      %v581 = vadd.f32 0.0, %v580
      %v582 = vpop.f32.mrf.mxu0
      %v583 = vadd.f32 0.0, %v582
      %584 = vmatmul.bf16.gmra.mxu0 %v501
      %v585 = vpop.f32.mrf.mxu0
      %v586 = vadd.f32 0.0, %v585
      %v587 = vpop.f32.mrf.mxu0
      %v588 = vadd.f32 0.0, %v587
      %589 = vmatmul.bf16.gmra.mxu0 %v504
      %v590 = vpop.f32.mrf.mxu0
      %v591 = vadd.f32 0.0, %v590
      %v592 = vpop.f32.mrf.mxu0
      %v593 = vadd.f32 0.0, %v592
      %594 = vdwg.mxu0
      %v627 = vunpack.c.l.b16 %v287
      %v628 = vunpack.c.l.b16 %v288
      %v629 = vunpack.c.l.b16 %v289
      %v630 = vunpack.c.l.b16 %v290
      %v631 = vunpack.c.l.b16 %v291
      %v632 = vunpack.c.l.b16 %v292
      %v633 = vunpack.c.l.b16 %v293
      %v634 = vunpack.c.l.b16 %v294
      %v635 = vunpack.c.l.b16 %v295
      %v636 = vunpack.c.l.b16 %v296
      %v637 = vunpack.c.l.b16 %v297
      %v638 = vunpack.c.l.b16 %v298
      %v639 = vunpack.c.l.b16 %v299
      %v640 = vunpack.c.l.b16 %v300
      %v641 = vunpack.c.l.b16 %v301
      %v642 = vunpack.c.l.b16 %v302
      %v643 = vunpack.c.l.b16 %v303
      %v644 = vunpack.c.l.b16 %v304
      %v645 = vunpack.c.l.b16 %v305
      %v646 = vunpack.c.l.b16 %v306
      %v647 = vunpack.c.l.b16 %v307
      %v648 = vunpack.c.l.b16 %v308
      %v649 = vunpack.c.l.b16 %v309
      %v650 = vunpack.c.l.b16 %v310
      %v651 = vunpack.c.l.b16 %v311
      %v652 = vunpack.c.l.b16 %v312
      %v653 = vunpack.c.l.b16 %v313
      %v654 = vunpack.c.l.b16 %v314
      %v655 = vunpack.c.l.b16 %v315
      %v656 = vunpack.c.l.b16 %v316
      %v657 = vunpack.c.l.b16 %v317
      %v658 = vunpack.c.l.b16 %v318
      %v659 = vpack.c.b16 %v628, %v627
      %v660 = vpack.c.b16 %v630, %v629
      %v661 = vpack.c.b16 %v632, %v631
      %v662 = vpack.c.b16 %v634, %v633
      %v663 = vpack.c.b16 %v636, %v635
      %v664 = vpack.c.b16 %v638, %v637
      %v665 = vpack.c.b16 %v640, %v639
      %v666 = vpack.c.b16 %v642, %v641
      %v667 = vpack.c.b16 %v644, %v643
      %v668 = vpack.c.b16 %v646, %v645
      %v669 = vpack.c.b16 %v648, %v647
      %v670 = vpack.c.b16 %v650, %v649
      %v671 = vpack.c.b16 %v652, %v651
      %v672 = vpack.c.b16 %v654, %v653
      %v673 = vpack.c.b16 %v656, %v655
      %v674 = vpack.c.b16 %v658, %v657
      %v679 = vunpack.c.l.b16 %v319
      %v680 = vunpack.c.l.b16 %v320
      %v681 = vunpack.c.l.b16 %v321
      %v682 = vunpack.c.l.b16 %v322
      %v683 = vpack.c.b16 %v680, %v679
      %v684 = vpack.c.b16 %v682, %v681
      %v688 = vsel %vm457, %v659, 0
      %v691 = vsel %vm457, %v660, 0
      %v694 = vsel %vm457, %v661, 0
      %v697 = vsel %vm457, %v662, 0
      %v700 = vsel %vm457, %v663, 0
      %v703 = vsel %vm457, %v664, 0
      %v706 = vsel %vm457, %v665, 0
      %v709 = vsel %vm457, %v666, 0
      %v712 = vsel %vm457, %v667, 0
      %v715 = vsel %vm457, %v668, 0
      %v718 = vsel %vm457, %v669, 0
      %v721 = vsel %vm457, %v670, 0
      %v724 = vsel %vm457, %v671, 0
      %v727 = vsel %vm457, %v672, 0
      %v730 = vsel %vm457, %v673, 0
      %v733 = vsel %vm457, %v674, 0
      %735 = vmatpush.bf16.msra.mxu0 0
      %736 = vmatpush.bf16.msra.mxu0 0
      %737 = vmatpush.bf16.msra.mxu0 0
      %738 = vmatpush.bf16.msra.mxu0 0
      %739 = vmatpush.bf16.msra.mxu0 0
      %740 = vmatpush.bf16.msra.mxu0 0
      %741 = vmatpush.bf16.msra.mxu0 %v684
      %742 = vmatpush.bf16.msra.mxu0 %v683
      %743 = vmatmul.bf16.gmra.mxu0 %v688
      %v744 = vpop.f32.mrf.mxu0
      %v745 = vadd.f32 %v516, %v744
      %v746 = vpop.f32.mrf.mxu0
      %v747 = vadd.f32 %v518, %v746
      %748 = vmatmul.bf16.gmra.mxu0 %v691
      %v749 = vpop.f32.mrf.mxu0
      %v750 = vadd.f32 %v521, %v749
      %v751 = vpop.f32.mrf.mxu0
      %v752 = vadd.f32 %v523, %v751
      %753 = vmatmul.bf16.gmra.mxu0 %v694
      %v754 = vpop.f32.mrf.mxu0
      %v755 = vadd.f32 %v526, %v754
      %v756 = vpop.f32.mrf.mxu0
      %v757 = vadd.f32 %v528, %v756
      %758 = vmatmul.bf16.gmra.mxu0 %v697
      %v759 = vpop.f32.mrf.mxu0
      %v760 = vadd.f32 %v531, %v759
      %v761 = vpop.f32.mrf.mxu0
      %v762 = vadd.f32 %v533, %v761
      %763 = vmatmul.bf16.gmra.mxu0 %v700
      %v764 = vpop.f32.mrf.mxu0
      %v765 = vadd.f32 %v536, %v764
      %v766 = vpop.f32.mrf.mxu0
      %v767 = vadd.f32 %v538, %v766
      %768 = vmatmul.bf16.gmra.mxu0 %v703
      %v769 = vpop.f32.mrf.mxu0
      %v770 = vadd.f32 %v541, %v769
      %v771 = vpop.f32.mrf.mxu0
      %v772 = vadd.f32 %v543, %v771
      %773 = vmatmul.bf16.gmra.mxu0 %v706
      %v774 = vpop.f32.mrf.mxu0
      %v775 = vadd.f32 %v546, %v774
      %v776 = vpop.f32.mrf.mxu0
      %v777 = vadd.f32 %v548, %v776
      %778 = vmatmul.bf16.gmra.mxu0 %v709
      %v779 = vpop.f32.mrf.mxu0
      %v780 = vadd.f32 %v551, %v779
      %v781 = vpop.f32.mrf.mxu0
      %v782 = vadd.f32 %v553, %v781
      %783 = vmatmul.bf16.gmra.mxu0 %v712
      %v784 = vpop.f32.mrf.mxu0
      %v785 = vadd.f32 %v556, %v784
      %v786 = vpop.f32.mrf.mxu0
      %v787 = vadd.f32 %v558, %v786
      %788 = vmatmul.bf16.gmra.mxu0 %v715
      %v789 = vpop.f32.mrf.mxu0
      %v790 = vadd.f32 %v561, %v789
      %v791 = vpop.f32.mrf.mxu0
      %v792 = vadd.f32 %v563, %v791
      %793 = vmatmul.bf16.gmra.mxu0 %v718
      %v794 = vpop.f32.mrf.mxu0
      %v795 = vadd.f32 %v566, %v794
      %v796 = vpop.f32.mrf.mxu0
      %v797 = vadd.f32 %v568, %v796
      %798 = vmatmul.bf16.gmra.mxu0 %v721
      %v799 = vpop.f32.mrf.mxu0
      %v800 = vadd.f32 %v571, %v799
      %v801 = vpop.f32.mrf.mxu0
      %v802 = vadd.f32 %v573, %v801
      %803 = vmatmul.bf16.gmra.mxu0 %v724
      %v804 = vpop.f32.mrf.mxu0
      %v805 = vadd.f32 %v576, %v804
      %v806 = vpop.f32.mrf.mxu0
      %v807 = vadd.f32 %v578, %v806
      %808 = vmatmul.bf16.gmra.mxu0 %v727
      %v809 = vpop.f32.mrf.mxu0
      %v810 = vadd.f32 %v581, %v809
      %v811 = vpop.f32.mrf.mxu0
      %v812 = vadd.f32 %v583, %v811
      %813 = vmatmul.bf16.gmra.mxu0 %v730
      %v814 = vpop.f32.mrf.mxu0
      %v815 = vadd.f32 %v586, %v814
      %v816 = vpop.f32.mrf.mxu0
      %v817 = vadd.f32 %v588, %v816
      %818 = vmatmul.bf16.gmra.mxu0 %v733
      %v819 = vpop.f32.mrf.mxu0
      %v820 = vadd.f32 %v591, %v819
      %v821 = vpop.f32.mrf.mxu0
      %v822 = vadd.f32 %v593, %v821
      %823 = vdwg.mxu0
      %s824 = sadd.s32 %s282, 32
      %s825 = sshra.s32 %s824, 3
      %s826 = sand.u32 %s824, 7
      %s827 = smul.addr %s825, 4
      %s828 = scalar_lea.vmem %s257, %s827
      %v829 = vld [vmem:[%s828] sm:$0xf]
      %v830 = vld [vmem:[%s828 + $0x4] sm:$0xf]
      %v831 = vld [vmem:[%s828 + $0x8] sm:$0xf]
      %v832 = vld [vmem:[%s828 + $0xc] sm:$0xf]
      %v833 = vld [vmem:[%s828 + $0x10] sm:$0xf]
      %v834 = vld [vmem:[%s828 + $0x14] sm:$0xf]
      %v835 = vld [vmem:[%s828 + $0x18] sm:$0xf]
      %v836 = vld [vmem:[%s828 + $0x1c] sm:$0xf]
      %v837 = vld [vmem:[%s828 + $0x20] sm:$0xf]
      %v838 = vld [vmem:[%s828 + $0x24] sm:$0xf]
      %v839 = vld [vmem:[%s828 + $0x28] sm:$0xf]
      %v840 = vld [vmem:[%s828 + $0x2c] sm:$0xf]
      %v841 = vld [vmem:[%s828 + $0x30] sm:$0xf]
      %v842 = vld [vmem:[%s828 + $0x34] sm:$0xf]
      %v843 = vld [vmem:[%s828 + $0x38] sm:$0xf]
      %v844 = vld [vmem:[%s828 + $0x3c] sm:$0xf]
      %v845 = vld [vmem:[%s828 + $0x40] sm:$0xf]
      %v846 = vld [vmem:[%s828 + $0x44] sm:$0xf]
      %v847 = vld [vmem:[%s828 + $0x48] sm:$0xf]
      %v848 = vld [vmem:[%s828 + $0x4c] sm:$0xf]
      %v849 = vld [vmem:[%s828 + $0x50] sm:$0xf]
      %v850 = vld [vmem:[%s828 + $0x54] sm:$0xf]
      %v851 = vld [vmem:[%s828 + $0x58] sm:$0xf]
      %v852 = vld [vmem:[%s828 + $0x5c] sm:$0xf]
      %v853 = vld [vmem:[%s828 + $0x60] sm:$0xf]
      %v854 = vld [vmem:[%s828 + $0x64] sm:$0xf]
      %v855 = vld [vmem:[%s828 + $0x68] sm:$0xf]
      %v856 = vld [vmem:[%s828 + $0x6c] sm:$0xf]
      %v857 = vld [vmem:[%s828 + $0x70] sm:$0xf]
      %v858 = vld [vmem:[%s828 + $0x74] sm:$0xf]
      %v859 = vld [vmem:[%s828 + $0x78] sm:$0xf]
      %v860 = vld [vmem:[%s828 + $0x7c] sm:$0xf]
      %s861 = scalar_lea.vmem %s261, 32
      %v862 = vld [vmem:[%s861] sm:$0xf]
      %v863 = vld [vmem:[%s861 + $0x4] sm:$0xf]
      %v864 = vld [vmem:[%s861 + $0x8] sm:$0xf]
      %v865 = vld [vmem:[%s861 + $0xc] sm:$0xf]
      %v898 = vunpack.c.l.b16 %v829
      %v899 = vunpack.c.l.b16 %v830
      %v900 = vunpack.c.l.b16 %v831
      %v901 = vunpack.c.l.b16 %v832
      %v902 = vunpack.c.l.b16 %v833
      %v903 = vunpack.c.l.b16 %v834
      %v904 = vunpack.c.l.b16 %v835
      %v905 = vunpack.c.l.b16 %v836
      %v906 = vunpack.c.l.b16 %v837
      %v907 = vunpack.c.l.b16 %v838
      %v908 = vunpack.c.l.b16 %v839
      %v909 = vunpack.c.l.b16 %v840
      %v910 = vunpack.c.l.b16 %v841
      %v911 = vunpack.c.l.b16 %v842
      %v912 = vunpack.c.l.b16 %v843
      %v913 = vunpack.c.l.b16 %v844
      %v914 = vunpack.c.l.b16 %v845
      %v915 = vunpack.c.l.b16 %v846
      %v916 = vunpack.c.l.b16 %v847
      %v917 = vunpack.c.l.b16 %v848
      %v918 = vunpack.c.l.b16 %v849
      %v919 = vunpack.c.l.b16 %v850
      %v920 = vunpack.c.l.b16 %v851
      %v921 = vunpack.c.l.b16 %v852
      %v922 = vunpack.c.l.b16 %v853
      %v923 = vunpack.c.l.b16 %v854
      %v924 = vunpack.c.l.b16 %v855
      %v925 = vunpack.c.l.b16 %v856
      %v926 = vunpack.c.l.b16 %v857
      %v927 = vunpack.c.l.b16 %v858
      %v928 = vunpack.c.l.b16 %v859
      %v929 = vunpack.c.l.b16 %v860
      %v930 = vpack.c.b16 %v899, %v898
      %v931 = vpack.c.b16 %v901, %v900
      %v932 = vpack.c.b16 %v903, %v902
      %v933 = vpack.c.b16 %v905, %v904
      %v934 = vpack.c.b16 %v907, %v906
      %v935 = vpack.c.b16 %v909, %v908
      %v936 = vpack.c.b16 %v911, %v910
      %v937 = vpack.c.b16 %v913, %v912
      %v938 = vpack.c.b16 %v915, %v914
      %v939 = vpack.c.b16 %v917, %v916
      %v940 = vpack.c.b16 %v919, %v918
      %v941 = vpack.c.b16 %v921, %v920
      %v942 = vpack.c.b16 %v923, %v922
      %v943 = vpack.c.b16 %v925, %v924
      %v944 = vpack.c.b16 %v927, %v926
      %v945 = vpack.c.b16 %v929, %v928
      %v950 = vunpack.c.l.b16 %v862
      %v951 = vunpack.c.l.b16 %v863
      %v952 = vunpack.c.l.b16 %v864
      %v953 = vunpack.c.l.b16 %v865
      %v954 = vpack.c.b16 %v951, %v950
      %v955 = vpack.c.b16 %v953, %v952
      %v959 = vsel %vm457, %v930, 0
      %v962 = vsel %vm457, %v931, 0
      %v965 = vsel %vm457, %v932, 0
      %v968 = vsel %vm457, %v933, 0
      %v971 = vsel %vm457, %v934, 0
      %v974 = vsel %vm457, %v935, 0
      %v977 = vsel %vm457, %v936, 0
      %v980 = vsel %vm457, %v937, 0
      %v983 = vsel %vm457, %v938, 0
      %v986 = vsel %vm457, %v939, 0
      %v989 = vsel %vm457, %v940, 0
      %v992 = vsel %vm457, %v941, 0
      %v995 = vsel %vm457, %v942, 0
      %v998 = vsel %vm457, %v943, 0
      %v1001 = vsel %vm457, %v944, 0
      %v1004 = vsel %vm457, %v945, 0
      %1006 = vmatpush.bf16.msra.mxu0 0
      %1007 = vmatpush.bf16.msra.mxu0 0
      %1008 = vmatpush.bf16.msra.mxu0 0
      %1009 = vmatpush.bf16.msra.mxu0 0
      %1010 = vmatpush.bf16.msra.mxu0 0
      %1011 = vmatpush.bf16.msra.mxu0 0
      %1012 = vmatpush.bf16.msra.mxu0 %v955
      %1013 = vmatpush.bf16.msra.mxu0 %v954
      %1014 = vmatmul.bf16.gmra.mxu0 %v959
      %v1015 = vpop.f32.mrf.mxu0
      %v1016 = vadd.f32 0.0, %v1015
      %v1017 = vpop.f32.mrf.mxu0
      %v1018 = vadd.f32 0.0, %v1017
      %1019 = vmatmul.bf16.gmra.mxu0 %v962
      %v1020 = vpop.f32.mrf.mxu0
      %v1021 = vadd.f32 0.0, %v1020
      %v1022 = vpop.f32.mrf.mxu0
      %v1023 = vadd.f32 0.0, %v1022
      %1024 = vmatmul.bf16.gmra.mxu0 %v965
      %v1025 = vpop.f32.mrf.mxu0
      %v1026 = vadd.f32 0.0, %v1025
      %v1027 = vpop.f32.mrf.mxu0
      %v1028 = vadd.f32 0.0, %v1027
      %1029 = vmatmul.bf16.gmra.mxu0 %v968
      %v1030 = vpop.f32.mrf.mxu0
      %v1031 = vadd.f32 0.0, %v1030
      %v1032 = vpop.f32.mrf.mxu0
      %v1033 = vadd.f32 0.0, %v1032
      %1034 = vmatmul.bf16.gmra.mxu0 %v971
      %v1035 = vpop.f32.mrf.mxu0
      %v1036 = vadd.f32 0.0, %v1035
      %v1037 = vpop.f32.mrf.mxu0
      %v1038 = vadd.f32 0.0, %v1037
      %1039 = vmatmul.bf16.gmra.mxu0 %v974
      %v1040 = vpop.f32.mrf.mxu0
      %v1041 = vadd.f32 0.0, %v1040
      %v1042 = vpop.f32.mrf.mxu0
      %v1043 = vadd.f32 0.0, %v1042
      %1044 = vmatmul.bf16.gmra.mxu0 %v977
      %v1045 = vpop.f32.mrf.mxu0
      %v1046 = vadd.f32 0.0, %v1045
      %v1047 = vpop.f32.mrf.mxu0
      %v1048 = vadd.f32 0.0, %v1047
      %1049 = vmatmul.bf16.gmra.mxu0 %v980
      %v1050 = vpop.f32.mrf.mxu0
      %v1051 = vadd.f32 0.0, %v1050
      %v1052 = vpop.f32.mrf.mxu0
      %v1053 = vadd.f32 0.0, %v1052
      %1054 = vmatmul.bf16.gmra.mxu0 %v983
      %v1055 = vpop.f32.mrf.mxu0
      %v1056 = vadd.f32 0.0, %v1055
      %v1057 = vpop.f32.mrf.mxu0
      %v1058 = vadd.f32 0.0, %v1057
      %1059 = vmatmul.bf16.gmra.mxu0 %v986
      %v1060 = vpop.f32.mrf.mxu0
      %v1061 = vadd.f32 0.0, %v1060
      %v1062 = vpop.f32.mrf.mxu0
      %v1063 = vadd.f32 0.0, %v1062
      %1064 = vmatmul.bf16.gmra.mxu0 %v989
      %v1065 = vpop.f32.mrf.mxu0
      %v1066 = vadd.f32 0.0, %v1065
      %v1067 = vpop.f32.mrf.mxu0
      %v1068 = vadd.f32 0.0, %v1067
      %1069 = vmatmul.bf16.gmra.mxu0 %v992
      %v1070 = vpop.f32.mrf.mxu0
      %v1071 = vadd.f32 0.0, %v1070
      %v1072 = vpop.f32.mrf.mxu0
      %v1073 = vadd.f32 0.0, %v1072
      %1074 = vmatmul.bf16.gmra.mxu0 %v995
      %v1075 = vpop.f32.mrf.mxu0
      %v1076 = vadd.f32 0.0, %v1075
      %v1077 = vpop.f32.mrf.mxu0
      %v1078 = vadd.f32 0.0, %v1077
      %1079 = vmatmul.bf16.gmra.mxu0 %v998
      %v1080 = vpop.f32.mrf.mxu0
      %v1081 = vadd.f32 0.0, %v1080
      %v1082 = vpop.f32.mrf.mxu0
      %v1083 = vadd.f32 0.0, %v1082
      %1084 = vmatmul.bf16.gmra.mxu0 %v1001
      %v1085 = vpop.f32.mrf.mxu0
      %v1086 = vadd.f32 0.0, %v1085
      %v1087 = vpop.f32.mrf.mxu0
      %v1088 = vadd.f32 0.0, %v1087
      %1089 = vmatmul.bf16.gmra.mxu0 %v1004
      %v1090 = vpop.f32.mrf.mxu0
      %v1091 = vadd.f32 0.0, %v1090
      %v1092 = vpop.f32.mrf.mxu0
      %v1093 = vadd.f32 0.0, %v1092
      %1094 = vdwg.mxu0
      %v1095 = vadd.f32 %v745, %v1016
      %v1096 = vadd.f32 %v747, %v1018
      %v1097 = vadd.f32 %v750, %v1021
      %v1098 = vadd.f32 %v752, %v1023
      %v1099 = vadd.f32 %v755, %v1026
      %v1100 = vadd.f32 %v757, %v1028
      %v1101 = vadd.f32 %v760, %v1031
      %v1102 = vadd.f32 %v762, %v1033
      %v1103 = vadd.f32 %v765, %v1036
      %v1104 = vadd.f32 %v767, %v1038
      %v1105 = vadd.f32 %v770, %v1041
      %v1106 = vadd.f32 %v772, %v1043
      %v1107 = vadd.f32 %v775, %v1046
      %v1108 = vadd.f32 %v777, %v1048
      %v1109 = vadd.f32 %v780, %v1051
      %v1110 = vadd.f32 %v782, %v1053
      %v1111 = vadd.f32 %v785, %v1056
      %v1112 = vadd.f32 %v787, %v1058
      %v1113 = vadd.f32 %v790, %v1061
      %v1114 = vadd.f32 %v792, %v1063
      %v1115 = vadd.f32 %v795, %v1066
      %v1116 = vadd.f32 %v797, %v1068
      %v1117 = vadd.f32 %v800, %v1071
      %v1118 = vadd.f32 %v802, %v1073
      %v1119 = vadd.f32 %v805, %v1076
      %v1120 = vadd.f32 %v807, %v1078
      %v1121 = vadd.f32 %v810, %v1081
      %v1122 = vadd.f32 %v812, %v1083
      %v1123 = vadd.f32 %v815, %v1086
      %v1124 = vadd.f32 %v817, %v1088
      %v1125 = vadd.f32 %v820, %v1091
      %v1126 = vadd.f32 %v822, %v1093
      %v1127 = vld [vmem:[%s264] sm:$0x1]
      %v1129 = vperm.slane %v1127, 0
      %v1131 = vmul.f32 %v1095, %v1129
      %v1132 = vmul.f32 %v1096, %v1129
      %v1133 = vmul.f32 %v1097, %v1129
      %v1134 = vmul.f32 %v1098, %v1129
      %v1135 = vmul.f32 %v1099, %v1129
      %v1136 = vmul.f32 %v1100, %v1129
      %v1137 = vmul.f32 %v1101, %v1129
      %v1138 = vmul.f32 %v1102, %v1129
      %v1139 = vmul.f32 %v1103, %v1129
      %v1140 = vmul.f32 %v1104, %v1129
      %v1141 = vmul.f32 %v1105, %v1129
      %v1142 = vmul.f32 %v1106, %v1129
      %v1143 = vmul.f32 %v1107, %v1129
      %v1144 = vmul.f32 %v1108, %v1129
      %v1145 = vmul.f32 %v1109, %v1129
      %v1146 = vmul.f32 %v1110, %v1129
      %v1147 = vmul.f32 %v1111, %v1129
      %v1148 = vmul.f32 %v1112, %v1129
      %v1149 = vmul.f32 %v1113, %v1129
      %v1150 = vmul.f32 %v1114, %v1129
      %v1151 = vmul.f32 %v1115, %v1129
      %v1152 = vmul.f32 %v1116, %v1129
      %v1153 = vmul.f32 %v1117, %v1129
      %v1154 = vmul.f32 %v1118, %v1129
      %v1155 = vmul.f32 %v1119, %v1129
      %v1156 = vmul.f32 %v1120, %v1129
      %v1157 = vmul.f32 %v1121, %v1129
      %v1158 = vmul.f32 %v1122, %v1129
      %v1159 = vmul.f32 %v1123, %v1129
      %v1160 = vmul.f32 %v1124, %v1129
      %v1161 = vmul.f32 %v1125, %v1129
      %v1162 = vmul.f32 %v1126, %v1129
      %v1163 = vld [vmem:[%s267] sm:$0x1]
      %v1165 = vperm.slane %v1163, 0
      %v1167 = vadd.f32 %v1131, %v1165
      %v1168 = vadd.f32 %v1132, %v1165
      %v1169 = vadd.f32 %v1133, %v1165
      %v1170 = vadd.f32 %v1134, %v1165
      %v1171 = vadd.f32 %v1135, %v1165
      %v1172 = vadd.f32 %v1136, %v1165
      %v1173 = vadd.f32 %v1137, %v1165
      %v1174 = vadd.f32 %v1138, %v1165
      %v1175 = vadd.f32 %v1139, %v1165
      %v1176 = vadd.f32 %v1140, %v1165
      %v1177 = vadd.f32 %v1141, %v1165
      %v1178 = vadd.f32 %v1142, %v1165
      %v1179 = vadd.f32 %v1143, %v1165
      %v1180 = vadd.f32 %v1144, %v1165
      %v1181 = vadd.f32 %v1145, %v1165
      %v1182 = vadd.f32 %v1146, %v1165
      %v1183 = vadd.f32 %v1147, %v1165
      %v1184 = vadd.f32 %v1148, %v1165
      %v1185 = vadd.f32 %v1149, %v1165
      %v1186 = vadd.f32 %v1150, %v1165
      %v1187 = vadd.f32 %v1151, %v1165
      %v1188 = vadd.f32 %v1152, %v1165
      %v1189 = vadd.f32 %v1153, %v1165
      %v1190 = vadd.f32 %v1154, %v1165
      %v1191 = vadd.f32 %v1155, %v1165
      %v1192 = vadd.f32 %v1156, %v1165
      %v1193 = vadd.f32 %v1157, %v1165
      %v1194 = vadd.f32 %v1158, %v1165
      %v1195 = vadd.f32 %v1159, %v1165
      %v1196 = vadd.f32 %v1160, %v1165
      %v1197 = vadd.f32 %v1161, %v1165
      %v1198 = vadd.f32 %v1162, %v1165
      %vm1199 = vcmp.gt.f32.partialorder %v1167, 0.0
      %vm1200 = vcmp.gt.f32.partialorder %v1168, 0.0
      %vm1201 = vcmp.gt.f32.partialorder %v1169, 0.0
      %vm1202 = vcmp.gt.f32.partialorder %v1170, 0.0
      %vm1203 = vcmp.gt.f32.partialorder %v1171, 0.0
      %vm1204 = vcmp.gt.f32.partialorder %v1172, 0.0
      %vm1205 = vcmp.gt.f32.partialorder %v1173, 0.0
      %vm1206 = vcmp.gt.f32.partialorder %v1174, 0.0
      %vm1207 = vcmp.gt.f32.partialorder %v1175, 0.0
      %vm1208 = vcmp.gt.f32.partialorder %v1176, 0.0
      %vm1209 = vcmp.gt.f32.partialorder %v1177, 0.0
      %vm1210 = vcmp.gt.f32.partialorder %v1178, 0.0
      %vm1211 = vcmp.gt.f32.partialorder %v1179, 0.0
      %vm1212 = vcmp.gt.f32.partialorder %v1180, 0.0
      %vm1213 = vcmp.gt.f32.partialorder %v1181, 0.0
      %vm1214 = vcmp.gt.f32.partialorder %v1182, 0.0
      %vm1215 = vcmp.gt.f32.partialorder %v1183, 0.0
      %vm1216 = vcmp.gt.f32.partialorder %v1184, 0.0
      %vm1217 = vcmp.gt.f32.partialorder %v1185, 0.0
      %vm1218 = vcmp.gt.f32.partialorder %v1186, 0.0
      %vm1219 = vcmp.gt.f32.partialorder %v1187, 0.0
      %vm1220 = vcmp.gt.f32.partialorder %v1188, 0.0
      %vm1221 = vcmp.gt.f32.partialorder %v1189, 0.0
      %vm1222 = vcmp.gt.f32.partialorder %v1190, 0.0
      %vm1223 = vcmp.gt.f32.partialorder %v1191, 0.0
      %vm1224 = vcmp.gt.f32.partialorder %v1192, 0.0
      %vm1225 = vcmp.gt.f32.partialorder %v1193, 0.0
      %vm1226 = vcmp.gt.f32.partialorder %v1194, 0.0
      %vm1227 = vcmp.gt.f32.partialorder %v1195, 0.0
      %vm1228 = vcmp.gt.f32.partialorder %v1196, 0.0
      %vm1229 = vcmp.gt.f32.partialorder %v1197, 0.0
      %vm1230 = vcmp.gt.f32.partialorder %v1198, 0.0
      %v1231 = vmul.f32 %v1167, 0.1
      %v1232 = vmul.f32 %v1168, 0.1
      %v1233 = vmul.f32 %v1169, 0.1
      %v1234 = vmul.f32 %v1170, 0.1
      %v1235 = vmul.f32 %v1171, 0.1
      %v1236 = vmul.f32 %v1172, 0.1
      %v1237 = vmul.f32 %v1173, 0.1
      %v1238 = vmul.f32 %v1174, 0.1
      %v1239 = vmul.f32 %v1175, 0.1
      %v1240 = vmul.f32 %v1176, 0.1
      %v1241 = vmul.f32 %v1177, 0.1
      %v1242 = vmul.f32 %v1178, 0.1
      %v1243 = vmul.f32 %v1179, 0.1
      %v1244 = vmul.f32 %v1180, 0.1
      %v1245 = vmul.f32 %v1181, 0.1
      %v1246 = vmul.f32 %v1182, 0.1
      %v1247 = vmul.f32 %v1183, 0.1
      %v1248 = vmul.f32 %v1184, 0.1
      %v1249 = vmul.f32 %v1185, 0.1
      %v1250 = vmul.f32 %v1186, 0.1
      %v1251 = vmul.f32 %v1187, 0.1
      %v1252 = vmul.f32 %v1188, 0.1
      %v1253 = vmul.f32 %v1189, 0.1
      %v1254 = vmul.f32 %v1190, 0.1
      %v1255 = vmul.f32 %v1191, 0.1
      %v1256 = vmul.f32 %v1192, 0.1
      %v1257 = vmul.f32 %v1193, 0.1
      %v1258 = vmul.f32 %v1194, 0.1
      %v1259 = vmul.f32 %v1195, 0.1
      %v1260 = vmul.f32 %v1196, 0.1
      %v1261 = vmul.f32 %v1197, 0.1
      %v1262 = vmul.f32 %v1198, 0.1
      %v1263 = vsel %vm1199, %v1167, %v1231
      %v1264 = vsel %vm1200, %v1168, %v1232
      %v1265 = vsel %vm1201, %v1169, %v1233
      %v1266 = vsel %vm1202, %v1170, %v1234
      %v1267 = vsel %vm1203, %v1171, %v1235
      %v1268 = vsel %vm1204, %v1172, %v1236
      %v1269 = vsel %vm1205, %v1173, %v1237
      %v1270 = vsel %vm1206, %v1174, %v1238
      %v1271 = vsel %vm1207, %v1175, %v1239
      %v1272 = vsel %vm1208, %v1176, %v1240
      %v1273 = vsel %vm1209, %v1177, %v1241
      %v1274 = vsel %vm1210, %v1178, %v1242
      %v1275 = vsel %vm1211, %v1179, %v1243
      %v1276 = vsel %vm1212, %v1180, %v1244
      %v1277 = vsel %vm1213, %v1181, %v1245
      %v1278 = vsel %vm1214, %v1182, %v1246
      %v1279 = vsel %vm1215, %v1183, %v1247
      %v1280 = vsel %vm1216, %v1184, %v1248
      %v1281 = vsel %vm1217, %v1185, %v1249
      %v1282 = vsel %vm1218, %v1186, %v1250
      %v1283 = vsel %vm1219, %v1187, %v1251
      %v1284 = vsel %vm1220, %v1188, %v1252
      %v1285 = vsel %vm1221, %v1189, %v1253
      %v1286 = vsel %vm1222, %v1190, %v1254
      %v1287 = vsel %vm1223, %v1191, %v1255
      %v1288 = vsel %vm1224, %v1192, %v1256
      %v1289 = vsel %vm1225, %v1193, %v1257
      %v1290 = vsel %vm1226, %v1194, %v1258
      %v1291 = vsel %vm1227, %v1195, %v1259
      %v1292 = vsel %vm1228, %v1196, %v1260
      %v1293 = vsel %vm1229, %v1197, %v1261
      %v1294 = vsel %vm1230, %v1198, %v1262
      %v1295 = vpack.c.bf16 %v1263, %v1263
      %v1296 = vpack.c.bf16 %v1264, %v1264
      %v1297 = vpack.c.bf16 %v1265, %v1265
      %v1298 = vpack.c.bf16 %v1266, %v1266
      %v1299 = vpack.c.bf16 %v1267, %v1267
      %v1300 = vpack.c.bf16 %v1268, %v1268
      %v1301 = vpack.c.bf16 %v1269, %v1269
      %v1302 = vpack.c.bf16 %v1270, %v1270
      %v1303 = vpack.c.bf16 %v1271, %v1271
      %v1304 = vpack.c.bf16 %v1272, %v1272
      %v1305 = vpack.c.bf16 %v1273, %v1273
      %v1306 = vpack.c.bf16 %v1274, %v1274
      %v1307 = vpack.c.bf16 %v1275, %v1275
      %v1308 = vpack.c.bf16 %v1276, %v1276
      %v1309 = vpack.c.bf16 %v1277, %v1277
      %v1310 = vpack.c.bf16 %v1278, %v1278
      %v1311 = vpack.c.bf16 %v1279, %v1279
      %v1312 = vpack.c.bf16 %v1280, %v1280
      %v1313 = vpack.c.bf16 %v1281, %v1281
      %v1314 = vpack.c.bf16 %v1282, %v1282
      %v1315 = vpack.c.bf16 %v1283, %v1283
      %v1316 = vpack.c.bf16 %v1284, %v1284
      %v1317 = vpack.c.bf16 %v1285, %v1285
      %v1318 = vpack.c.bf16 %v1286, %v1286
      %v1319 = vpack.c.bf16 %v1287, %v1287
      %v1320 = vpack.c.bf16 %v1288, %v1288
      %v1321 = vpack.c.bf16 %v1289, %v1289
      %v1322 = vpack.c.bf16 %v1290, %v1290
      %v1323 = vpack.c.bf16 %v1291, %v1291
      %v1324 = vpack.c.bf16 %v1292, %v1292
      %v1325 = vpack.c.bf16 %v1293, %v1293
      %v1326 = vpack.c.bf16 %v1294, %v1294
      %vm1327 = vcmask 257024
      %1328 = vst.msk [vmem:[%s279] sm:$0xf] %vm1327, %v1295
      %1329 = vst.msk [vmem:[%s279 + $0x4] sm:$0xf] %vm1327, %v1296
      %1330 = vst.msk [vmem:[%s279 + $0x8] sm:$0xf] %vm1327, %v1297
      %1331 = vst.msk [vmem:[%s279 + $0xc] sm:$0xf] %vm1327, %v1298
      %1332 = vst.msk [vmem:[%s279 + $0x10] sm:$0xf] %vm1327, %v1299
      %1333 = vst.msk [vmem:[%s279 + $0x14] sm:$0xf] %vm1327, %v1300
      %1334 = vst.msk [vmem:[%s279 + $0x18] sm:$0xf] %vm1327, %v1301
      %1335 = vst.msk [vmem:[%s279 + $0x1c] sm:$0xf] %vm1327, %v1302
      %1336 = vst.msk [vmem:[%s279 + $0x20] sm:$0xf] %vm1327, %v1303
      %1337 = vst.msk [vmem:[%s279 + $0x24] sm:$0xf] %vm1327, %v1304
      %1338 = vst.msk [vmem:[%s279 + $0x28] sm:$0xf] %vm1327, %v1305
      %1339 = vst.msk [vmem:[%s279 + $0x2c] sm:$0xf] %vm1327, %v1306
      %1340 = vst.msk [vmem:[%s279 + $0x30] sm:$0xf] %vm1327, %v1307
      %1341 = vst.msk [vmem:[%s279 + $0x34] sm:$0xf] %vm1327, %v1308
      %1342 = vst.msk [vmem:[%s279 + $0x38] sm:$0xf] %vm1327, %v1309
      %1343 = vst.msk [vmem:[%s279 + $0x3c] sm:$0xf] %vm1327, %v1310
      %1344 = vst.msk [vmem:[%s279 + $0x40] sm:$0xf] %vm1327, %v1311
      %1345 = vst.msk [vmem:[%s279 + $0x44] sm:$0xf] %vm1327, %v1312
      %1346 = vst.msk [vmem:[%s279 + $0x48] sm:$0xf] %vm1327, %v1313
      %1347 = vst.msk [vmem:[%s279 + $0x4c] sm:$0xf] %vm1327, %v1314
      %1348 = vst.msk [vmem:[%s279 + $0x50] sm:$0xf] %vm1327, %v1315
      %1349 = vst.msk [vmem:[%s279 + $0x54] sm:$0xf] %vm1327, %v1316
      %1350 = vst.msk [vmem:[%s279 + $0x58] sm:$0xf] %vm1327, %v1317
      %1351 = vst.msk [vmem:[%s279 + $0x5c] sm:$0xf] %vm1327, %v1318
      %1352 = vst.msk [vmem:[%s279 + $0x60] sm:$0xf] %vm1327, %v1319
      %1353 = vst.msk [vmem:[%s279 + $0x64] sm:$0xf] %vm1327, %v1320
      %1354 = vst.msk [vmem:[%s279 + $0x68] sm:$0xf] %vm1327, %v1321
      %1355 = vst.msk [vmem:[%s279 + $0x6c] sm:$0xf] %vm1327, %v1322
      %1356 = vst.msk [vmem:[%s279 + $0x70] sm:$0xf] %vm1327, %v1323
      %1357 = vst.msk [vmem:[%s279 + $0x74] sm:$0xf] %vm1327, %v1324
      %1358 = vst.msk [vmem:[%s279 + $0x78] sm:$0xf] %vm1327, %v1325
      %1359 = vst.msk [vmem:[%s279 + $0x7c] sm:$0xf] %vm1327, %v1326
      %s1360 = smul.u32 32, %s22
      %p1361 = scmp.lt.s32.totalorder %s20, 1
      %s1362 = scalar_select %p1361, %s20, 1
      %p1363 = scmp.lt.s32.totalorder %s1360, 31
      %s1364 = scalar_select %p1363, %s1360, 31
      %p1365 = scmp.lt.s32.totalorder %s21, 0
      %s1366 = scalar_select %p1365, %s21, 0
      %s1367 = sadd.s32 %s1366, %s1364
      %s1368 = smul.addr %s1362, 32
      %s1369 = sadd.s32 %s1367, %s1368
      %s1370 = smul.addr %s1369, 4
      %s1371 = scalar_lea.vmem %s4, %s1370
      // Predicated region
      $region37: #{tpu_custom_call.1} parent=35 // pred_check
        %p1372 = pneg %p160
      $region38: #{tpu_custom_call.1} parent=35 // pred_check_branch
        %1374 = sbr.rel (%p1372) target = $region40
      $region39: #{tpu_custom_call.1} parent=35 // pred_region
        %s1375 = smul.u32 32, %s22
      $region40: #{tpu_custom_call.1} parent=35 // pred_fallthru
        _
    $region36: #{tpu_custom_call.1} parent=5 // pred_fallthru
      _
    %p1376 = scmp.le.s32.totalorder 2, %s10
    // Predicated region
    $region41: #{tpu_custom_call.1} parent=5 // pred_check
      %p1377 = pneg %p1376
    $region42: #{tpu_custom_call.1} parent=5 // pred_check_branch
      %1379 = sbr.rel (%p1377) target = $region44
    $region43: #{tpu_custom_call.1} parent=5 // pred_region
      %s1380 = ssub.s32 %s10, 2
      // Predicated region
      $region45: #{tpu_custom_call.1} parent=43 // pred_check
        %p1381 = pneg %p166
      $region46: #{tpu_custom_call.1} parent=43 // pred_check_branch
        %1383 = sbr.rel (%p1381) target = $region48
      $region47: #{tpu_custom_call.1} parent=43 // pred_region
        %s1384 = smul.u32 32, %s25
        %p1385 = scmp.lt.s32.totalorder %s23, 1
        %s1386 = scalar_select %p1385, %s23, 1
        %p1387 = scmp.lt.s32.totalorder %s1384, 31
        %s1388 = scalar_select %p1387, %s1384, 31
        %p1389 = scmp.lt.s32.totalorder %s24, 0
        %s1390 = scalar_select %p1389, %s24, 0
        %s1391 = sadd.s32 %s1390, %s1388
        %s1392 = smul.addr %s1386, 32
        %s1393 = sadd.s32 %s1391, %s1392
        %s1394 = smul.addr %s1393, 4
        %s1395 = scalar_lea.vmem %s4, %s1394
      $region48: #{tpu_custom_call.1} parent=43 // pred_fallthru
        _
    $region44: #{tpu_custom_call.1} parent=5 // pred_fallthru
      _
  $region6: #{tpu_custom_call.1} parent=0 // loop_footer
    %s14 = sadd.s32 1, %s10
  $region7: #{tpu_custom_call.1} parent=0 // loop_footer_branch
    %9 = sbr.rel target = $region3
  $region8: #{tpu_custom_call.1} parent=0 // loop_exit
    _

</llo_original>
